<compile_context>
chip_gen: v5e
topology: v5e:2x2
jax: 0.10.0
libtpu: 0.0.40
codegen_flags: <defaults>
</compile_context>

<pallas_src>
import functools

import jax
import jax.numpy as jnp
from jax import lax
from jax.experimental import pallas as pl
from jax.experimental.pallas import tpu as pltpu


def _round_up(x, m):
    return (x + m - 1) // m * m


def _cdiv(a, b):
    return (a + b - 1) // b


def _pick_vmem_limit():
    """Generation-aware scoped-VMEM limit for the pallas_call."""
    try:
        cap = int(pltpu.get_tpu_info().vmem_capacity_bytes)
    except Exception:
        cap = 64 * 1024 * 1024  # conservative: v7x physical VMEM per TensorCore
    # ~70% of physical, capped at 64 MiB (plenty for a streaming reduction even
    # on 128 MiB parts) -> v7x ~44.8 MiB, v5e/v6e 64 MiB.
    return int(min(cap * 7 // 10, 64 * 1024 * 1024))


def _smoothness_partial_kernel(x_ref, psum_ref, *, coord_dim, ngc):
    """One (block_rows, block_cols) tile -> scalar partial sum of squared diffs."""
    # Cast per tile; the HBM->VMEM DMA stays in the storage dtype (e.g. bf16).
    xf = x_ref[...].astype(jnp.float32)
    rows, cols = xf.shape
    # Shift-left-by-C along the lane axis with one XLU roll (positive shift
    # cols - C is the circular equivalent of -C): rolled[j] = xf[(j+C) % cols].
    rolled = pltpu.roll(xf, shift=cols - coord_dim, axis=1)
    lane = lax.broadcasted_iota(jnp.int32, (rows, cols), dimension=1)
    # Global flattened position of this lane inside the (Ng*C)-long row.
    f = pl.program_id(1) * cols + lane
    # Valid diff positions: no wrap inside the tile and f indexes a real
    # neighbour pair (f < Ng*C - C).  This also kills the zero-padded lanes.
    valid = (lane < cols - coord_dim) & (f < ngc - coord_dim)
    d = jnp.where(valid, rolled - xf, 0.0)
    psum_ref[0, 0] = jnp.sum(d * d)


def geometry_smoothness_loss(
    geometry_graph, *, block_rows=None, block_cols=None, force_pallas=False
):
    """Pallas implementation of GeometrySmoothnessLoss.forward."""
    x = jnp.asarray(geometry_graph)
    B, Ng, C = x.shape
    if Ng < 2:
        # The PyTorch loop does not execute -> loss is 0.
        return jnp.float32(0.0)

    itemsize = x.dtype.itemsize
    if not force_pallas and x.size * itemsize < (2 << 20):
        # Small graphs: XLA-fused elementwise+reduce beats pallas_call dispatch
        # plus single-block DMA prime/drain.
        xf = x.astype(jnp.float32)
        d = xf[:, 1:, :] - xf[:, :-1, :]
        return jnp.sum(d * d) / jnp.float32(B * C)

    ngc = Ng * C
    x2 = x.reshape(B, ngc)           # contiguous reshape: free, lane-dense layout
    ngc_pad = _round_up(ngc, 128)    # lane-aligned width

    # Sub-32-bit dtypes pack rows along sublanes: keep row blocks a multiple of
    # the packing factor (f32 -> 8, bf16 -> 16, int8/fp8 -> 32).
    row_mult = max(8, 32 // itemsize)

    vmem_limit = _pick_vmem_limit()
    # Per-element VMEM cost of a tile: 2x double-buffered input (storage dtype)
    # + ~4 tile-sized f32 temporaries (cast, rolled, diff, masked).
    elem_budget = int(vmem_limit * 0.85) // (2 * itemsize + 16)
    elem_budget = min(elem_budget, (16 << 20) // itemsize)  # cap a DMA tile at 16 MiB
    elem_budget = max(elem_budget, row_mult * 128)

    # --- node-axis (column) tiling ----------------------------------------
    if block_cols is None:
        if row_mult * ngc_pad <= elem_budget:
            block_cols = ngc_pad  # whole (padded) row fits in one tile
        else:
            block_cols = max(128, (elem_budget // row_mult) // 128 * 128)
    else:
        block_cols = _round_up(int(block_cols), 128)
    block_cols = min(block_cols, ngc_pad)
    num_col_blocks = _cdiv(ngc_pad, block_cols)
    col_pad = num_col_blocks * block_cols

    # --- batch tiling -------------------------------------------------------
    if block_rows is None:
        rows = max(row_mult, (elem_budget // block_cols) // row_mult * row_mult)
        # Aim for >= ~4 grid steps so the DMA pipeline has depth and v7x's two
        # TensorCores both get work for moderate batch sizes.
        min_row_blocks = _cdiv(4, num_col_blocks)
        rows = min(rows, _round_up(_cdiv(B, min_row_blocks), row_mult))
        block_rows = max(rows, row_mult)
    else:
        block_rows = _round_up(max(int(block_rows), 1), row_mult)
    block_rows = min(block_rows, _round_up(B, row_mult))
    b_pad = _round_up(B, block_rows)
    num_row_blocks = b_pad // block_rows

    if b_pad != B or col_pad != ngc:
        # Zero padding: padded batch rows give zero diffs; padded / wrapped
        # lanes are masked inside the kernel.
        x2p = jnp.pad(x2, ((0, b_pad - B), (0, col_pad - ngc)))
    else:
        x2p = x2

    kernel = functools.partial(_smoothness_partial_kernel, coord_dim=C, ngc=ngc)
    cost = pl.CostEstimate(
        flops=3 * B * (Ng - 1) * C,
        transcendentals=0,
        bytes_accessed=b_pad * col_pad * itemsize
        + num_row_blocks * num_col_blocks * 4,
    )

    # TODO(synk): consider pipeline_mode=pl.Buffered(3) on the input spec if a
    # v7x trace shows exposed DMA gaps with small tiles and many grid steps.
    partials = pl.pallas_call(
        kernel,
        out_shape=jax.ShapeDtypeStruct((num_row_blocks, num_col_blocks), jnp.float32),
        grid=(num_row_blocks, num_col_blocks),
        in_specs=[pl.BlockSpec((block_rows, block_cols), lambda i, j: (i, j))],
        out_specs=pl.BlockSpec(
            (1, 1), lambda i, j: (i, j), memory_space=pltpu.MemorySpace.SMEM
        ),
        compiler_params=pltpu.CompilerParams(
            dimension_semantics=("parallel", "parallel"),
            vmem_limit_bytes=vmem_limit,
        ),
        cost_estimate=cost,
    )(x2p)

    total = jnp.sum(partials)

    # Diffs that straddle a column-block boundary (the last C lanes of every
    # non-final column block wrap inside their tile and are masked out in the
    # kernel).  At most (num_col_blocks - 1) * C columns per batch row -> a
    # tiny XLA gather in the wrapper handles them exactly once.
    if num_col_blocks > 1:
        limit = ngc - C
        boundary = [
            k * block_cols + j
            for k in range(num_col_blocks)
            for j in range(block_cols - C, block_cols)
            if k * block_cols + j < limit
        ]
        if boundary:
            idx = jnp.asarray(boundary, dtype=jnp.int32)
            lo = jnp.take(x2, idx, axis=1).astype(jnp.float32)
            hi = jnp.take(x2, idx + C, axis=1).astype(jnp.float32)
            total = total + jnp.sum((hi - lo) ** 2)

    # total / (B*C) == sum over nodes of per-node MSE means, exactly as PyTorch.
    return total / jnp.float32(B * C)


def _reference(geometry_graph):
    x = jnp.asarray(geometry_graph, dtype=jnp.float32)
    d = x[:, 1:, :] - x[:, :-1, :]
    # sum_i mean_{b,c} (x[:,i,:] - x[:,i-1,:])**2  == the PyTorch F.mse_loss loop
    return jnp.sum(jnp.mean(d * d, axis=(0, 2)))


if __name__ == "__main__":
    key = jax.random.PRNGKey(0)
    k1, k2, k3 = jax.random.split(key, 3)

    # Toy shape implied by the module: batch=2, Ng=8 nodes, 3-D coordinates.
    B, Ng, C = 2, 8, 3
    g_small = jax.random.normal(k1, (B, Ng, C), dtype=jnp.float32)
    loss_small = geometry_smoothness_loss(g_small, force_pallas=True)
    jax.block_until_ready(loss_small)
    ref_small = _reference(g_small)
    assert jnp.allclose(loss_small, ref_small, rtol=1e-4, atol=1e-5), (
        loss_small,
        ref_small,
    )

    # Batch padding + multi-row-block "parallel" grid.
    B2, Ng2, C2 = 20, 64, 3
    g_big = jax.random.normal(k2, (B2, Ng2, C2), dtype=jnp.float32)
    loss_big = geometry_smoothness_loss(g_big, block_rows=8, force_pallas=True)
    jax.block_until_ready(loss_big)
    ref_big = _reference(g_big)
    assert jnp.allclose(loss_big, ref_big, rtol=1e-4, atol=1e-5), (loss_big, ref_big)

    # Node-axis (column) tiling path with cross-block boundary correction.
    B3, Ng3, C3 = 4, 200, 3
    g_cols = jax.random.normal(k3, (B3, Ng3, C3), dtype=jnp.float32)
    loss_cols = geometry_smoothness_loss(
        g_cols, block_rows=8, block_cols=256, force_pallas=True
    )
    jax.block_until_ready(loss_cols)
    ref_cols = _reference(g_cols)
    assert jnp.allclose(loss_cols, ref_cols, rtol=1e-4, atol=1e-5), (
        loss_cols,
        ref_cols,
    )

    print("KERNEL_OK")
</pallas_src>

<mosaic_0001>
module attributes {stable_mosaic.version = 11 : i64} {
  func.func @_smoothness_partial_kernel(%arg0: i32, %arg1: i32, %arg2: memref<8x128xf32, #tpu.memory_space<vmem>>, %arg3: memref<1x1xf32, #tpu.memory_space<smem>>) attributes {dimension_semantics = [#tpu.dimension_semantics<parallel>, #tpu.dimension_semantics<parallel>], iteration_bounds = array<i64: 1, 1>, scalar_prefetch = 0 : i64, scratch_operands = 0 : i64, tpu.core_type = #tpu.core_type<tc>, window_params = [{transform_indices = @transform_0, window_bounds = array<i64: 8, 128>}, {transform_indices = @transform_1, window_bounds = array<i64: 1, 1>}]} {
    %c0 = arith.constant 0 : index
    %c0_0 = arith.constant 0 : index
    %0 = vector.load %arg2[%c0, %c0_0] : memref<8x128xf32, #tpu.memory_space<vmem>>, vector<8x128xf32>
    %c125_i32 = arith.constant 125 : i32
    %1 = tpu.dynamic_rotate %0 by %c125_i32 dim 1 : vector<8x128xf32>, i32 -> vector<8x128xf32>
    %2 = tpu.iota {dimensions = array<i32: 1>} : vector<8x128xi32>
    %c128_i32 = arith.constant 128 : i32
    %3 = arith.muli %arg1, %c128_i32 : i32
    %4 = vector.broadcast %3 : i32 to vector<8x128xi32>
    %5 = arith.addi %4, %2 : vector<8x128xi32>
    %c125_i32_1 = arith.constant 125 : i32
    %6 = vector.broadcast %c125_i32_1 : i32 to vector<8x128xi32>
    %7 = arith.cmpi slt, %2, %6 : vector<8x128xi32>
    %c21_i32 = arith.constant 21 : i32
    %8 = vector.broadcast %c21_i32 : i32 to vector<8x128xi32>
    %9 = arith.cmpi slt, %5, %8 : vector<8x128xi32>
    %10 = arith.andi %7, %9 : vector<8x128xi1>
    %11 = arith.subf %1, %0 : vector<8x128xf32>
    %cst = arith.constant 0.000000e+00 : f32
    %12 = vector.broadcast %cst : f32 to vector<8x128xf32>
    %13 = arith.select %10, %11, %12 : vector<8x128xi1>, vector<8x128xf32>
    %14 = arith.mulf %13, %13 : vector<8x128xf32>
    %15 = vector.shape_cast %14 : vector<8x128xf32> to vector<1x8x128xf32>
    %cst_2 = arith.constant dense<0.000000e+00> : vector<1xf32>
    %16 = vector.multi_reduction <add>, %15, %cst_2 [1, 2] : vector<1x8x128xf32> to vector<1xf32>
    %17 = vector.shape_cast %16 : vector<1xf32> to vector<1x1x1xf32>
    %18 = vector.extract %17[0, 0, 0] : f32 from vector<1x1x1xf32>
    %c0_3 = arith.constant 0 : index
    %c0_4 = arith.constant 0 : index
    %19 = memref.load %arg3[%c0_3, %c0_4] : memref<1x1xf32, #tpu.memory_space<smem>>
    memref.store %18, %arg3[%c0_3, %c0_4] : memref<1x1xf32, #tpu.memory_space<smem>>
    return
  }
  func.func @transform_0(%arg0: i32, %arg1: i32) -> (i32, i32) {
    %c0_i32 = arith.constant 0 : i32
    return %arg0, %arg1 : i32, i32
  }
  func.func @transform_1(%arg0: i32, %arg1: i32) -> (i32, i32) {
    %c0_i32 = arith.constant 0 : i32
    return %arg0, %arg1 : i32, i32
  }
}

</mosaic_0001>

<llo_original>
// kernel: tpu_custom_call.1
$region0: #{tpu_custom_call.1}
  #allocation0 [shape = 'u32[]', space=smem, size = 0x4, offset = 0x4, fixed_abs, tag = 'smem constant byte address 0x4 - core index']
  #allocation1 [shape = 'u32[72,128]{1,0:T(1,128)}', space=vmem, size = 0x9000, scoped, tag = 'internal scratch']
  %s0 = inlined_call_operand.hbm [shape: f32[8,128], index: 0, kind: input, shape index: {}]
  %s1 = inlined_call_operand.hbm [shape: f32[1,1], index: 1, kind: output, shape index: {}]
  %s2 = sld [smem:[#allocation0]]
  $region18: #{tpu_custom_call.1} parent=0
    _
  %s4 = ssub.s32 1, %s2
  %s5 = scalar_select 0, %s4, %s2
  $region1: #{tpu_custom_call.1} parent=0
    #allocation2 [shape = 'u8[4096]{0}', space=vmem, size = 0x1000, scoped, tag = 'input window, operand 0, single buffered']
    #allocation3 [shape = 's32[1]{0}', space=sflag, size = 0x4, scoped, tag = 'scoped memory for tpu_custom_call.1']
    #allocation4 [shape = 's32[1]{0}', space=sflag, size = 0x4, scoped, tag = 'scoped memory for tpu_custom_call.1']
    #allocation5 [shape = 'u8[512]{0}', space=smem, size = 0x200, scoped, tag = 'output window, operand 0, single buffered']
    %6 = vsyncpa [#allocation3], 0
    %7 = vsyncpa [#allocation4], 0
    // Predicated region
    $region2: #{tpu_custom_call.1} parent=1 // pred_check
      _
    $region3: #{tpu_custom_call.1} parent=1 // pred_check_branch
      %9 = sbr.rel (0) target = $region5
    $region4: #{tpu_custom_call.1} parent=1 // pred_region
      %11 = vsyncadd [#allocation3], 0
      %s13 = sshll.u32 %s0, 4
      %s14 = int_to_ptr.hbm [resolvable:$true] %s13
      %s15 = sshll.u32 [#allocation2], 4
      %s16 = int_to_ptr.vmem [resolvable:$true] %s15
      %18 = dma.hbm_to_vmem [thread:$0]  %s14, 128, %s16, [#allocation3]
    $region5: #{tpu_custom_call.1} parent=1 // pred_fallthru
      _
    // Predicated region
    $region6: #{tpu_custom_call.1} parent=1 // pred_check
      _
    $region7: #{tpu_custom_call.1} parent=1 // pred_check_branch
      %20 = sbr.rel (0) target = $region9
    $region8: #{tpu_custom_call.1} parent=1 // pred_region
      %22 = dma.done [#allocation3], 128
    $region9: #{tpu_custom_call.1} parent=1 // pred_fallthru
      _
    %v23 = vld [vmem:[#allocation2] sm:$0xff]
    %24 = vrot.lane.b32.xlu0 %v23, 125
    %v25 = vpop.permute.xlu0 %24
    %v26 = vlaneseq
    %v27 = vand.u32 %v26, 127
    %s28 = smul.u32 0, 128
    %v29 = vstv %s28
    %v30 = vadd.s32 %v29, %v27
    %vm31 = vcmp.lt.s32.totalorder %v27, 125
    %vm32 = vcmp.lt.s32.totalorder %v30, 21
    %vm33 = vmand %vm31, %vm32
    %v34 = vsub.f32 %v25, %v23
    %v35 = vsel %vm33, %v34, 0.0
    %v36 = vmul.f32 %v35, %v35
    %37 = vadd.xlane.f32.xlu0 %v36
    %v38 = vpop.xlane.xlu0 %37
    %v39 = vrot.slane %v38, 4
    %v40 = vadd.f32 %v38, %v39
    %v41 = vrot.slane %v40, 2
    %v42 = vadd.f32 %v40, %v41
    %v43 = vrot.slane %v42, 1
    %v44 = vadd.f32 %v42, %v43
    %s45 = vtos %v44
    %s46 = scalar_lea.smem [#allocation5], 0
    %47 = sst [smem:[%s46]] %s45
    // Predicated region
    $region10: #{tpu_custom_call.1} parent=1 // pred_check
      _
    $region11: #{tpu_custom_call.1} parent=1 // pred_check_branch
      %49 = sbr.rel (0) target = $region13
    $region12: #{tpu_custom_call.1} parent=1 // pred_region
      %51 = vsyncadd [#allocation4], 0
      %s53 = sshll.u32 %s1, 4
      %s54 = int_to_ptr.hbm [resolvable:$true] %s53
      %56 = dma.smem_to_hbm [#allocation5], 16, %s54, [#allocation4]
    $region13: #{tpu_custom_call.1} parent=1 // pred_fallthru
      _
    // Predicated region
    $region14: #{tpu_custom_call.1} parent=1 // pred_check
      _
    $region15: #{tpu_custom_call.1} parent=1 // pred_check_branch
      %58 = sbr.rel (0) target = $region17
    $region16: #{tpu_custom_call.1} parent=1 // pred_region
      %60 = dma.done [#allocation4], 16
    $region17: #{tpu_custom_call.1} parent=1 // pred_fallthru
      _
    %61 = sfence
    %62 = vsyncpa [#allocation3], 1
    %63 = vsyncpa [#allocation4], 1

</llo_original>
